<compile_context>
chip_gen: v7x
topology: tpu7x:2x2x1
jax: 0.10.0
libtpu: 0.0.40
codegen_flags: <defaults>
</compile_context>

<pallas_src>
import jax
import jax.numpy as jnp
from jax.experimental import pallas as pl
from jax.experimental.pallas import tpu as pltpu


def _round_up(x, m):
    return ((x + m - 1) // m) * m


def spam_mlp_kernel(x_ref, w1_ref, b1_ref, w2_ref, b2_ref, w3_ref, b3_ref, o_ref):
    """One batch tile of the forward pass.

    x:  (TB, F)   bf16
    w1: (F, 128)  bf16   b1: (1, 128) f32
    w2: (128, 64) bf16   b2: (1, 64)  f32
    w3: (1, 64)   f32    b3: (1, 1)   f32   (fc3 weight stored as a row)
    o:  (TB, 1)   f32
    """
    x = x_ref[...]

    # fc1 + ReLU (MXU, bf16 operands, f32 accumulate).
    # Note: K=32 under-fills the MXU K dim, but this kernel is HBM-bound on x,
    # so that is not the binding slot.
    h1 = jnp.dot(x, w1_ref[...], preferred_element_type=jnp.float32) + b1_ref[...]
    h1 = jnp.maximum(h1, 0.0)

    # Dropout(p=0.5): identity at inference time (PyTorch eval mode).
    # TODO(synk): training-mode dropout (pltpu.prng_random_bits mask) not implemented.

    # fc2 + ReLU (MXU, bf16 operands, f32 accumulate)
    h2 = jnp.dot(h1.astype(jnp.bfloat16), w2_ref[...],
                 preferred_element_type=jnp.float32) + b2_ref[...]
    h2 = jnp.maximum(h2, 0.0)                       # (TB, 64) f32

    # fc3: replace the N=1 MXU matmul with VPU multiply + XLU lane reduce.
    logits = jnp.sum(h2 * w3_ref[...], axis=-1, keepdims=True) + b3_ref[...]

    # Sigmoid on the EUP slot: exp + approximate reciprocal (otherwise idle).
    e = jnp.exp(-logits)
    o_ref[...] = pl.reciprocal(1.0 + e, approx=True)


def spam_classifier_forward(x, params, *, block_batch=2048):
    """x: (B, F) float32 -> (B, 1) float32 probabilities."""
    w1, b1, w2, b2, w3, b3 = params
    B, F = x.shape

    # Batch tile: large enough to amortize ~0.35us/step grid overhead, small
    # enough that per-step VMEM (bf16 x tile x2 buffers + f32 intermediates)
    # stays a few MiB -> safe on v5e/v6e/v7x. Sweep block_batch per generation.
    TB = min(block_batch, _round_up(B, 8))
    Bp = _round_up(B, TB)

    # Pad ragged batch up to a multiple of the tile; padded rows dropped below.
    if Bp != B:
        x = jnp.pad(x, ((0, Bp - B), (0, 0)))

    # bf16 for the streamed / matmul operands; accumulation stays f32.
    x_bf = x.astype(jnp.bfloat16)
    w1_bf = w1.astype(jnp.bfloat16)
    w2_bf = w2.astype(jnp.bfloat16)
    w3_row = jnp.reshape(w3, (1, 64)).astype(jnp.float32)   # (64,1) -> (1,64)

    grid = (Bp // TB,)
    resident = lambda shape: pl.BlockSpec(shape, lambda i: (0, 0))

    out = pl.pallas_call(
        spam_mlp_kernel,
        out_shape=jax.ShapeDtypeStruct((Bp, 1), jnp.float32),
        grid=grid,
        in_specs=[
            pl.BlockSpec((TB, F), lambda i: (i, 0)),   # x: streamed batch tiles
            resident((F, 128)),                        # w1 (VMEM-resident)
            resident((1, 128)),                        # b1
            resident((128, 64)),                       # w2
            resident((1, 64)),                         # b2
            resident((1, 64)),                         # w3 row
            resident((1, 1)),                          # b3
        ],
        out_specs=pl.BlockSpec((TB, 1), lambda i: (i, 0)),
        compiler_params=pltpu.CompilerParams(
            dimension_semantics=("parallel",),         # megacore split on v7x
            vmem_limit_bytes=64 * 1024 * 1024,
        ),
    )(x_bf, w1_bf, b1, w2_bf, b2, w3_row, b3)

    return out[:B]


def init_params(key, input_size):
    """Deterministic init mirroring nn.Linear shapes (stored as (in, out))."""
    k1, k2, k3, k4, k5, k6 = jax.random.split(key, 6)

    def linear(kw, kb, fan_in, fan_out):
        bound = 1.0 / jnp.sqrt(fan_in)
        w = jax.random.uniform(kw, (fan_in, fan_out), jnp.float32, -bound, bound)
        b = jax.random.uniform(kb, (1, fan_out), jnp.float32, -bound, bound)
        return w, b

    w1, b1 = linear(k1, k2, input_size, 128)
    w2, b2 = linear(k3, k4, 128, 64)
    w3, b3 = linear(k5, k6, 64, 1)
    return (w1, b1, w2, b2, w3, b3)


def reference_forward(x, params):
    """Pure-JAX f32 reference (PyTorch eval-mode semantics)."""
    w1, b1, w2, b2, w3, b3 = params
    h1 = jnp.maximum(x @ w1 + b1, 0.0)
    h2 = jnp.maximum(h1 @ w2 + b2, 0.0)
    return jax.nn.sigmoid(h2 @ w3 + b3)


if __name__ == "__main__":
    key = jax.random.PRNGKey(0)
    k_x, k_p = jax.random.split(key)

    batch, input_size = 8, 32
    x = jax.random.normal(k_x, (batch, input_size), dtype=jnp.float32)
    params = init_params(k_p, input_size)

    out = spam_classifier_forward(x, params)
    out = jax.block_until_ready(out)

    assert out.shape == (batch, 1), out.shape
    assert bool(jnp.all(jnp.isfinite(out)))

    ref = reference_forward(x, params)
    max_err = float(jnp.max(jnp.abs(out - ref)))
    assert max_err < 2e-2, f"max abs err vs f32 reference: {max_err}"  # bf16 tolerance

    print("KERNEL_OK")
</pallas_src>

<mosaic_0001>
module attributes {stable_mosaic.version = 11 : i64} {
  func.func @spam_mlp_kernel(%arg0: i32, %arg1: memref<8x32xbf16, #tpu.memory_space<vmem>>, %arg2: memref<32x128xbf16, #tpu.memory_space<vmem>>, %arg3: memref<1x128xf32, #tpu.memory_space<vmem>>, %arg4: memref<128x64xbf16, #tpu.memory_space<vmem>>, %arg5: memref<1x64xf32, #tpu.memory_space<vmem>>, %arg6: memref<1x64xf32, #tpu.memory_space<vmem>>, %arg7: memref<1x1xf32, #tpu.memory_space<vmem>>, %arg8: memref<8x1xf32, #tpu.memory_space<vmem>>) attributes {dimension_semantics = [#tpu.dimension_semantics<parallel>], iteration_bounds = array<i64: 1>, scalar_prefetch = 0 : i64, scratch_operands = 0 : i64, tpu.core_type = #tpu.core_type<tc>, window_params = [{transform_indices = @transform_0, window_bounds = array<i64: 8, 32>}, {pipeline_mode = #tpu.pipeline_mode<synchronous>, transform_indices = @transform_1, window_bounds = array<i64: 32, 128>}, {pipeline_mode = #tpu.pipeline_mode<synchronous>, transform_indices = @transform_2, window_bounds = array<i64: 1, 128>}, {pipeline_mode = #tpu.pipeline_mode<synchronous>, transform_indices = @transform_3, window_bounds = array<i64: 128, 64>}, {pipeline_mode = #tpu.pipeline_mode<synchronous>, transform_indices = @transform_4, window_bounds = array<i64: 1, 64>}, {pipeline_mode = #tpu.pipeline_mode<synchronous>, transform_indices = @transform_5, window_bounds = array<i64: 1, 64>}, {pipeline_mode = #tpu.pipeline_mode<synchronous>, transform_indices = @transform_6, window_bounds = array<i64: 1, 1>}, {transform_indices = @transform_7, window_bounds = array<i64: 8, 1>}]} {
    %c0 = arith.constant 0 : index
    %c0_0 = arith.constant 0 : index
    %0 = vector.load %arg1[%c0, %c0_0] : memref<8x32xbf16, #tpu.memory_space<vmem>>, vector<8x32xbf16>
    %c0_1 = arith.constant 0 : index
    %c0_2 = arith.constant 0 : index
    %1 = vector.load %arg2[%c0_1, %c0_2] : memref<32x128xbf16, #tpu.memory_space<vmem>>, vector<32x128xbf16>
    %cst = arith.constant dense<0.000000e+00> : vector<8x128xf32>
    %2 = tpu.matmul %0, %1, %cst {dimension_numbers = #tpu.dot_dimension_numbers<[1], [0], [0], [1], [0, 0, 1, 1], [], []>} : vector<8x32xbf16>, vector<32x128xbf16>, vector<8x128xf32> -> vector<8x128xf32>
    %c0_3 = arith.constant 0 : index
    %c0_4 = arith.constant 0 : index
    %3 = vector.load %arg3[%c0_3, %c0_4] : memref<1x128xf32, #tpu.memory_space<vmem>>, vector<1x128xf32>
    %4 = vector.broadcast %3 : vector<1x128xf32> to vector<8x128xf32>
    %5 = arith.addf %2, %4 : vector<8x128xf32>
    %cst_5 = arith.constant 0.000000e+00 : f32
    %6 = vector.broadcast %cst_5 : f32 to vector<8x128xf32>
    %7 = arith.maximumf %5, %6 : vector<8x128xf32>
    %8 = arith.truncf %7 : vector<8x128xf32> to vector<8x128xbf16>
    %c0_6 = arith.constant 0 : index
    %c0_7 = arith.constant 0 : index
    %9 = vector.load %arg4[%c0_6, %c0_7] : memref<128x64xbf16, #tpu.memory_space<vmem>>, vector<128x64xbf16>
    %cst_8 = arith.constant dense<0.000000e+00> : vector<8x64xf32>
    %10 = tpu.matmul %8, %9, %cst_8 {dimension_numbers = #tpu.dot_dimension_numbers<[1], [0], [0], [1], [0, 0, 1, 1], [], []>} : vector<8x128xbf16>, vector<128x64xbf16>, vector<8x64xf32> -> vector<8x64xf32>
    %c0_9 = arith.constant 0 : index
    %c0_10 = arith.constant 0 : index
    %11 = vector.load %arg5[%c0_9, %c0_10] : memref<1x64xf32, #tpu.memory_space<vmem>>, vector<1x64xf32>
    %12 = vector.broadcast %11 : vector<1x64xf32> to vector<8x64xf32>
    %13 = arith.addf %10, %12 : vector<8x64xf32>
    %cst_11 = arith.constant 0.000000e+00 : f32
    %14 = vector.broadcast %cst_11 : f32 to vector<8x64xf32>
    %15 = arith.maximumf %13, %14 : vector<8x64xf32>
    %c0_12 = arith.constant 0 : index
    %c0_13 = arith.constant 0 : index
    %16 = vector.load %arg6[%c0_12, %c0_13] : memref<1x64xf32, #tpu.memory_space<vmem>>, vector<1x64xf32>
    %17 = vector.broadcast %16 : vector<1x64xf32> to vector<8x64xf32>
    %18 = arith.mulf %15, %17 : vector<8x64xf32>
    %cst_14 = arith.constant dense<0.000000e+00> : vector<8xf32>
    %19 = vector.multi_reduction <add>, %18, %cst_14 [1] : vector<8x64xf32> to vector<8xf32>
    %20 = vector.shape_cast %19 : vector<8xf32> to vector<8x1xf32>
    %c0_15 = arith.constant 0 : index
    %c0_16 = arith.constant 0 : index
    %21 = vector.load %arg7[%c0_15, %c0_16] : memref<1x1xf32, #tpu.memory_space<vmem>>, vector<1x1xf32>
    %22 = vector.broadcast %21 : vector<1x1xf32> to vector<8x1xf32>
    %23 = arith.addf %20, %22 : vector<8x1xf32>
    %cst_17 = arith.constant 0.000000e+00 : f32
    %24 = vector.broadcast %cst_17 : f32 to vector<8x1xf32>
    %25 = arith.subf %24, %23 : vector<8x1xf32>
    %26 = math.exp %25 : vector<8x1xf32>
    %cst_18 = arith.constant 1.000000e+00 : f32
    %27 = vector.broadcast %cst_18 : f32 to vector<8x1xf32>
    %28 = arith.addf %27, %26 : vector<8x1xf32>
    %29 = tpu.reciprocal %28 {approx = true} : vector<8x1xf32> -> vector<8x1xf32>
    %c0_19 = arith.constant 0 : index
    %c0_20 = arith.constant 0 : index
    %30 = vector.load %arg8[%c0_19, %c0_20] : memref<8x1xf32, #tpu.memory_space<vmem>>, vector<8x1xf32>
    tpu.vector_store %arg8[%c0_19, %c0_20], %29 {strides = array<i32>} : memref<8x1xf32, #tpu.memory_space<vmem>>, vector<8x1xf32>,
    return
  }
  func.func @transform_0(%arg0: i32) -> (i32, i32) {
    %c0_i32 = arith.constant 0 : i32
    %c0_i32_0 = arith.constant 0 : i32
    return %arg0, %c0_i32 : i32, i32
  }
  func.func @transform_1(%arg0: i32) -> (i32, i32) {
    %c0_i32 = arith.constant 0 : i32
    %c0_i32_0 = arith.constant 0 : i32
    %c0_i32_1 = arith.constant 0 : i32
    return %c0_i32, %c0_i32_0 : i32, i32
  }
  func.func @transform_2(%arg0: i32) -> (i32, i32) {
    %c0_i32 = arith.constant 0 : i32
    %c0_i32_0 = arith.constant 0 : i32
    %c0_i32_1 = arith.constant 0 : i32
    return %c0_i32, %c0_i32_0 : i32, i32
  }
  func.func @transform_3(%arg0: i32) -> (i32, i32) {
    %c0_i32 = arith.constant 0 : i32
    %c0_i32_0 = arith.constant 0 : i32
    %c0_i32_1 = arith.constant 0 : i32
    return %c0_i32, %c0_i32_0 : i32, i32
  }
  func.func @transform_4(%arg0: i32) -> (i32, i32) {
    %c0_i32 = arith.constant 0 : i32
    %c0_i32_0 = arith.constant 0 : i32
    %c0_i32_1 = arith.constant 0 : i32
    return %c0_i32, %c0_i32_0 : i32, i32
  }
  func.func @transform_5(%arg0: i32) -> (i32, i32) {
    %c0_i32 = arith.constant 0 : i32
    %c0_i32_0 = arith.constant 0 : i32
    %c0_i32_1 = arith.constant 0 : i32
    return %c0_i32, %c0_i32_0 : i32, i32
  }
  func.func @transform_6(%arg0: i32) -> (i32, i32) {
    %c0_i32 = arith.constant 0 : i32
    %c0_i32_0 = arith.constant 0 : i32
    %c0_i32_1 = arith.constant 0 : i32
    return %c0_i32, %c0_i32_0 : i32, i32
  }
  func.func @transform_7(%arg0: i32) -> (i32, i32) {
    %c0_i32 = arith.constant 0 : i32
    %c0_i32_0 = arith.constant 0 : i32
    return %arg0, %c0_i32 : i32, i32
  }
}

</mosaic_0001>

<llo_original>
// kernel: tpu_custom_call.1
$region0: #{tpu_custom_call.1}
  #allocation0 [shape = 'u32[]', space=smem, size = 0x4, offset = 0x4, fixed_abs, tag = 'smem constant byte address 0x4 - core index']
  #allocation1 [shape = 'u32[144,128]{1,0:T(1,128)}', space=vmem, size = 0x12000, scoped, tag = 'internal scratch']
  #allocation2 [shape = 'f32[1,1]{1,0:T(1,128)S(1)}', space=vmem, size = 0x200, scoped, tag = 'scoped memory for tpu_custom_call.1']
  %s0 = inlined_call_operand.hbm [shape: bf16[8,32], index: 0, kind: input, shape index: {}]
  %s1 = inlined_call_operand.hbm [shape: bf16[32,128], index: 1, kind: input, shape index: {}]
  %s2 = inlined_call_operand.hbm [shape: f32[1,128], index: 2, kind: input, shape index: {}]
  %s3 = inlined_call_operand.hbm [shape: bf16[128,64], index: 3, kind: input, shape index: {}]
  %s4 = inlined_call_operand.hbm [shape: f32[1,64], index: 4, kind: input, shape index: {}]
  %s5 = inlined_call_operand.hbm [shape: f32[1,64], index: 5, kind: input, shape index: {}]
  %s6 = inlined_call_operand.<no memory space> [shape: f32[1,1], index: 6, kind: input, shape index: {}]
  %s7 = inlined_call_operand.hbm [shape: f32[8,1], index: 7, kind: output, shape index: {}]
  %s8 = sld [smem:[#allocation0]]
  $region62: #{tpu_custom_call.1} parent=0
    _
  %s10 = ssub.s32 1, %s8
  %s11 = scalar_select 0, %s10, %s8
  %v12 = vstv %s6
  %13 = vst [vmem:[#allocation2] sm:$0x1] %v12
  $region1: #{tpu_custom_call.1} parent=0
    #allocation3 [shape = 'u8[2048]{0}', space=vmem, size = 0x800, scoped, tag = 'input window, operand 0, single buffered']
    #allocation4 [shape = 's32[1]{0}', space=sflag, size = 0x4, scoped, tag = 'scoped memory for tpu_custom_call.1']
    #allocation5 [shape = 's32[1]{0}', space=sflag, size = 0x4, scoped, tag = 'scoped memory for tpu_custom_call.1']
    #allocation6 [shape = 'u8[8192]{0}', space=vmem, size = 0x2000, scoped, tag = 'input window, operand 1, single buffered']
    #allocation7 [shape = 's32[1]{0}', space=sflag, size = 0x4, scoped, tag = 'scoped memory for tpu_custom_call.1']
    #allocation8 [shape = 'u8[512]{0}', space=vmem, size = 0x400, scoped, tag = 'input window, operand 2, single buffered']
    #allocation9 [shape = 'u8[32768]{0}', space=vmem, size = 0x8000, scoped, tag = 'input window, operand 3, single buffered']
    #allocation10 [shape = 's32[1]{0}', space=sflag, size = 0x4, scoped, tag = 'scoped memory for tpu_custom_call.1']
    #allocation11 [shape = 'u8[512]{0}', space=vmem, size = 0x400, scoped, tag = 'input window, operand 4, single buffered']
    #allocation12 [shape = 'u8[512]{0}', space=vmem, size = 0x400, scoped, tag = 'input window, operand 5, single buffered']
    #allocation13 [shape = 's32[1]{0}', space=sflag, size = 0x4, scoped, tag = 'scoped memory for tpu_custom_call.1']
    #allocation14 [shape = 'u8[4096]{0}', space=vmem, size = 0x1000, scoped, tag = 'output window, operand 0, single buffered']
    %14 = vsyncpa [#allocation4], 0
    %15 = vsyncpa [#allocation7], 0
    %16 = vsyncpa [#allocation10], 0
    %17 = vsyncpa [#allocation13], 0
    %18 = vsyncpa [#allocation5], 0
    // Predicated region
    $region2: #{tpu_custom_call.1} parent=1 // pred_check
      _
    $region3: #{tpu_custom_call.1} parent=1 // pred_check_branch
      %20 = sbr.rel (0) target = $region5
    $region4: #{tpu_custom_call.1} parent=1 // pred_region
      %s22 = ssub.s32 64, 64
      %23 = vsyncadd [#allocation4], %s22
      %s25 = sshll.u32 [#allocation3], 4
      %s26 = int_to_ptr.vmem [resolvable:$true] %s25
      %28 = dma.hbm_to_vmem [thread:$0]  %s0, 64, %s26, [#allocation4]
    $region5: #{tpu_custom_call.1} parent=1 // pred_fallthru
      _
    // Predicated region
    $region6: #{tpu_custom_call.1} parent=1 // pred_check
      _
    $region7: #{tpu_custom_call.1} parent=1 // pred_check_branch
      %30 = sbr.rel (0) target = $region9
    $region8: #{tpu_custom_call.1} parent=1 // pred_region
      %s32 = ssub.s32 256, 256
      %33 = vsyncadd [#allocation7], %s32
      %s34 = sshll.u32 [#allocation6], 4
      %s35 = int_to_ptr.vmem [resolvable:$true] %s34
      %40 = dma.hbm_to_vmem [thread:$0]  %s1, 256, %s35, [#allocation7], 64, 64, 4
    $region9: #{tpu_custom_call.1} parent=1 // pred_fallthru
      _
    // Predicated region
    $region10: #{tpu_custom_call.1} parent=1 // pred_check
      _
    $region11: #{tpu_custom_call.1} parent=1 // pred_check_branch
      %42 = sbr.rel (0) target = $region13
    $region12: #{tpu_custom_call.1} parent=1 // pred_region
      %s44 = ssub.s32 16, 16
      %45 = vsyncadd [#allocation7], %s44
      %s47 = sshll.u32 [#allocation8], 4
      %s48 = int_to_ptr.vmem [resolvable:$true] %s47
      %50 = dma.hbm_to_vmem [thread:$0]  %s2, 16, %s48, [#allocation7]
    $region13: #{tpu_custom_call.1} parent=1 // pred_fallthru
      _
    // Predicated region
    $region14: #{tpu_custom_call.1} parent=1 // pred_check
      _
    $region15: #{tpu_custom_call.1} parent=1 // pred_check_branch
      %52 = sbr.rel (0) target = $region17
    $region16: #{tpu_custom_call.1} parent=1 // pred_region
      %s54 = ssub.s32 1024, 1024
      %55 = vsyncadd [#allocation10], %s54
      %s56 = sshll.u32 [#allocation9], 4
      %s57 = int_to_ptr.vmem [resolvable:$true] %s56
      %62 = dma.hbm_to_vmem [thread:$0]  %s3, 1024, %s57, [#allocation10], 64, 64, 4
    $region17: #{tpu_custom_call.1} parent=1 // pred_fallthru
      _
    // Predicated region
    $region18: #{tpu_custom_call.1} parent=1 // pred_check
      _
    $region19: #{tpu_custom_call.1} parent=1 // pred_check_branch
      %64 = sbr.rel (0) target = $region21
    $region20: #{tpu_custom_call.1} parent=1 // pred_region
      %s66 = ssub.s32 16, 16
      %67 = vsyncadd [#allocation10], %s66
      %s69 = sshll.u32 [#allocation11], 4
      %s70 = int_to_ptr.vmem [resolvable:$true] %s69
      %72 = dma.hbm_to_vmem [thread:$0]  %s4, 16, %s70, [#allocation10]
    $region21: #{tpu_custom_call.1} parent=1 // pred_fallthru
      _
    // Predicated region
    $region22: #{tpu_custom_call.1} parent=1 // pred_check
      _
    $region23: #{tpu_custom_call.1} parent=1 // pred_check_branch
      %74 = sbr.rel (0) target = $region25
    $region24: #{tpu_custom_call.1} parent=1 // pred_region
      %s76 = ssub.s32 16, 16
      %77 = vsyncadd [#allocation13], %s76
      %s79 = sshll.u32 [#allocation12], 4
      %s80 = int_to_ptr.vmem [resolvable:$true] %s79
      %82 = dma.hbm_to_vmem [thread:$0]  %s5, 16, %s80, [#allocation13]
    $region25: #{tpu_custom_call.1} parent=1 // pred_fallthru
      _
    // Predicated region
    $region26: #{tpu_custom_call.1} parent=1 // pred_check
      _
    $region27: #{tpu_custom_call.1} parent=1 // pred_check_branch
      %84 = sbr.rel (0) target = $region29
    $region28: #{tpu_custom_call.1} parent=1 // pred_region
      _
    $region29: #{tpu_custom_call.1} parent=1 // pred_fallthru
      _
    // Predicated region
    $region30: #{tpu_custom_call.1} parent=1 // pred_check
      _
    $region31: #{tpu_custom_call.1} parent=1 // pred_check_branch
      %86 = sbr.rel (0) target = $region33
    $region32: #{tpu_custom_call.1} parent=1 // pred_region
      %87 = dma.done [#allocation4], 64
    $region33: #{tpu_custom_call.1} parent=1 // pred_fallthru
      _
    // Predicated region
    $region34: #{tpu_custom_call.1} parent=1 // pred_check
      _
    $region35: #{tpu_custom_call.1} parent=1 // pred_check_branch
      %89 = sbr.rel (0) target = $region37
    $region36: #{tpu_custom_call.1} parent=1 // pred_region
      %90 = dma.done [#allocation7], 256
    $region37: #{tpu_custom_call.1} parent=1 // pred_fallthru
      _
    // Predicated region
    $region38: #{tpu_custom_call.1} parent=1 // pred_check
      _
    $region39: #{tpu_custom_call.1} parent=1 // pred_check_branch
      %92 = sbr.rel (0) target = $region41
    $region40: #{tpu_custom_call.1} parent=1 // pred_region
      %93 = dma.done [#allocation7], 16
    $region41: #{tpu_custom_call.1} parent=1 // pred_fallthru
      _
    // Predicated region
    $region42: #{tpu_custom_call.1} parent=1 // pred_check
      _
    $region43: #{tpu_custom_call.1} parent=1 // pred_check_branch
      %95 = sbr.rel (0) target = $region45
    $region44: #{tpu_custom_call.1} parent=1 // pred_region
      %96 = dma.done [#allocation10], 1024
    $region45: #{tpu_custom_call.1} parent=1 // pred_fallthru
      _
    // Predicated region
    $region46: #{tpu_custom_call.1} parent=1 // pred_check
      _
    $region47: #{tpu_custom_call.1} parent=1 // pred_check_branch
      %98 = sbr.rel (0) target = $region49
    $region48: #{tpu_custom_call.1} parent=1 // pred_region
      %99 = dma.done [#allocation10], 16
    $region49: #{tpu_custom_call.1} parent=1 // pred_fallthru
      _
    // Predicated region
    $region50: #{tpu_custom_call.1} parent=1 // pred_check
      _
    $region51: #{tpu_custom_call.1} parent=1 // pred_check_branch
      %101 = sbr.rel (0) target = $region53
    $region52: #{tpu_custom_call.1} parent=1 // pred_region
      %102 = dma.done [#allocation13], 16
    $region53: #{tpu_custom_call.1} parent=1 // pred_fallthru
      _
    %v104 = vld [vmem:[#allocation3] sm:$0xf]
    %v105 = vld [vmem:[#allocation6] sm:$0xf]
    %v106 = vld [vmem:[#allocation6 + $0x4] sm:$0xf]
    %v107 = vld [vmem:[#allocation6 + $0x8] sm:$0xf]
    %v108 = vld [vmem:[#allocation6 + $0xc] sm:$0xf]
    %v109 = vld [vmem:[#allocation8] sm:$0x1]
    %v111 = vlaneseq
    %v112 = vshrl.u32 %v111, 7
    %v113 = vsub.s32 0, %v112
    %v114 = vrot.slane %v109, %v113
    %v120 = vunpack.c.l.b16 %v105
    %v121 = vunpack.c.l.b16 %v106
    %v122 = vunpack.c.l.b16 %v107
    %v123 = vunpack.c.l.b16 %v108
    %v124 = vpack.c.b16 %v121, %v120
    %v125 = vpack.c.b16 %v123, %v122
    %vm128 = vcmask 261120
    %v130 = vsel %vm128, %v104, 0
    %132 = vmatprep.subr.bf16.mxu0 0
    %133 = vmatpush1.bf16.msra.mxu0 %v124
    %134 = vmatprep.subr.bf16.mxu0 0
    %135 = vmatpush1.bf16.msra.mxu0 %v125
    %136 = vmatprep.subr.bf16.mxu0 0
    %137 = vmatpush1.bf16.msra.mxu0 0
    %138 = vmatprep.subr.bf16.mxu0 0
    %139 = vmatpush1.bf16.msra.mxu0 0
    %140 = vmatprep.subr.bf16.mxu0 0
    %141 = vmatpush1.bf16.msra.mxu0 0
    %142 = vmatprep.subr.bf16.mxu0 0
    %143 = vmatpush1.bf16.msra.mxu0 0
    %144 = vmatprep.subr.bf16.mxu0 0
    %145 = vmatpush1.bf16.msra.mxu0 0
    %146 = vmatprep.subr.bf16.mxu0 0
    %147 = vmatpush1.bf16.msra.mxu0 0
    %148 = vmatprep.subr.bf16.mxu0 0
    %149 = vmatpush1.bf16.msra.mxu0 0
    %150 = vmatprep.subr.bf16.mxu0 0
    %151 = vmatpush1.bf16.msra.mxu0 0
    %152 = vmatprep.subr.bf16.mxu0 0
    %153 = vmatpush1.bf16.msra.mxu0 0
    %154 = vmatprep.subr.bf16.mxu0 0
    %155 = vmatpush1.bf16.msra.mxu0 0
    %156 = vmatprep.subr.bf16.mxu0 0
    %157 = vmatpush1.bf16.msra.mxu0 0
    %158 = vmatprep.subr.bf16.mxu0 0
    %159 = vmatpush1.bf16.msra.mxu0 0
    %160 = vmatprep.subr.bf16.mxu0 0
    %161 = vmatpush1.bf16.msra.mxu0 0
    %162 = vmatprep.subr.bf16.mxu0 0
    %163 = vmatpush1.bf16.msra.mxu0 0
    %164 = vmatprep.mubr.bf16.mxu0 0
    %165 = vmatmul.mubr.bf16.gmra.mrb[0].mxu0 %v130
    %v166 = vpop.f32.mrb[0].mxu0
    %v167 = vadd.f32 %v114, %v166
    %v168 = vpop.f32.mrb[0].mxu0
    %v169 = vpop.f32.mrb[0].mxu0
    %v170 = vpop.f32.mrb[0].mxu0
    %171 = vdwg.mxu0
    %v172 = vmax.f32 %v167, 0.0
    %v173 = vpack.c.bf16 %v172, %v172
    %v174 = vld [vmem:[#allocation9] sm:$0xf]
    %v175 = vld [vmem:[#allocation9 + $0x4] sm:$0xf]
    %v176 = vld [vmem:[#allocation9 + $0x8] sm:$0xf]
    %v177 = vld [vmem:[#allocation9 + $0xc] sm:$0xf]
    %v178 = vld [vmem:[#allocation9 + $0x10] sm:$0xf]
    %v179 = vld [vmem:[#allocation9 + $0x14] sm:$0xf]
    %v180 = vld [vmem:[#allocation9 + $0x18] sm:$0xf]
    %v181 = vld [vmem:[#allocation9 + $0x1c] sm:$0xf]
    %v182 = vld [vmem:[#allocation9 + $0x20] sm:$0xf]
    %v183 = vld [vmem:[#allocation9 + $0x24] sm:$0xf]
    %v184 = vld [vmem:[#allocation9 + $0x28] sm:$0xf]
    %v185 = vld [vmem:[#allocation9 + $0x2c] sm:$0xf]
    %v186 = vld [vmem:[#allocation9 + $0x30] sm:$0xf]
    %v187 = vld [vmem:[#allocation9 + $0x34] sm:$0xf]
    %v188 = vld [vmem:[#allocation9 + $0x38] sm:$0xf]
    %v189 = vld [vmem:[#allocation9 + $0x3c] sm:$0xf]
    %v190 = vld [vmem:[#allocation11] sm:$0x1]
    %v192 = vlaneseq
    %v193 = vshrl.u32 %v192, 7
    %v194 = vsub.s32 0, %v193
    %v195 = vrot.slane %v190, %v194
    %v213 = vunpack.c.l.b16 %v174
    %v214 = vunpack.c.l.b16 %v175
    %v215 = vunpack.c.l.b16 %v176
    %v216 = vunpack.c.l.b16 %v177
    %v217 = vunpack.c.l.b16 %v178
    %v218 = vunpack.c.l.b16 %v179
    %v219 = vunpack.c.l.b16 %v180
    %v220 = vunpack.c.l.b16 %v181
    %v221 = vunpack.c.l.b16 %v182
    %v222 = vunpack.c.l.b16 %v183
    %v223 = vunpack.c.l.b16 %v184
    %v224 = vunpack.c.l.b16 %v185
    %v225 = vunpack.c.l.b16 %v186
    %v226 = vunpack.c.l.b16 %v187
    %v227 = vunpack.c.l.b16 %v188
    %v228 = vunpack.c.l.b16 %v189
    %v229 = vpack.c.b16 %v214, %v213
    %v230 = vpack.c.b16 %v216, %v215
    %v231 = vpack.c.b16 %v218, %v217
    %v232 = vpack.c.b16 %v220, %v219
    %v233 = vpack.c.b16 %v222, %v221
    %v234 = vpack.c.b16 %v224, %v223
    %v235 = vpack.c.b16 %v226, %v225
    %v236 = vpack.c.b16 %v228, %v227
    %245 = vmatprep.subr.bf16.mxu0 0
    %246 = vmatpush1.bf16.msra.mxu0 %v229
    %247 = vmatprep.subr.bf16.mxu0 0
    %248 = vmatpush1.bf16.msra.mxu0 %v230
    %249 = vmatprep.subr.bf16.mxu0 0
    %250 = vmatpush1.bf16.msra.mxu0 %v231
    %251 = vmatprep.subr.bf16.mxu0 0
    %252 = vmatpush1.bf16.msra.mxu0 %v232
    %253 = vmatprep.subr.bf16.mxu0 0
    %254 = vmatpush1.bf16.msra.mxu0 %v233
    %255 = vmatprep.subr.bf16.mxu0 0
    %256 = vmatpush1.bf16.msra.mxu0 %v234
    %257 = vmatprep.subr.bf16.mxu0 0
    %258 = vmatpush1.bf16.msra.mxu0 %v235
    %259 = vmatprep.subr.bf16.mxu0 0
    %260 = vmatpush1.bf16.msra.mxu0 %v236
    %261 = vmatprep.subr.bf16.mxu0 0
    %262 = vmatpush1.bf16.msra.mxu0 0
    %263 = vmatprep.subr.bf16.mxu0 0
    %264 = vmatpush1.bf16.msra.mxu0 0
    %265 = vmatprep.subr.bf16.mxu0 0
    %266 = vmatpush1.bf16.msra.mxu0 0
    %267 = vmatprep.subr.bf16.mxu0 0
    %268 = vmatpush1.bf16.msra.mxu0 0
    %269 = vmatprep.subr.bf16.mxu0 0
    %270 = vmatpush1.bf16.msra.mxu0 0
    %271 = vmatprep.subr.bf16.mxu0 0
    %272 = vmatpush1.bf16.msra.mxu0 0
    %273 = vmatprep.subr.bf16.mxu0 0
    %274 = vmatpush1.bf16.msra.mxu0 0
    %275 = vmatprep.subr.bf16.mxu0 0
    %276 = vmatpush1.bf16.msra.mxu0 0
    %277 = vmatprep.mubr.bf16.mxu0 0
    %278 = vmatmul.mubr.bf16.gmra.mrb[0].mxu0 %v173
    %v279 = vpop.f32.mrb[0].mxu0
    %v280 = vadd.f32 %v195, %v279
    %v281 = vpop.f32.mrb[0].mxu0
    %v282 = vpop.f32.mrb[0].mxu0
    %v283 = vpop.f32.mrb[0].mxu0
    %284 = vdwg.mxu0
    %v285 = vmax.f32 %v280, 0.0
    %v286 = vld [vmem:[#allocation12] sm:$0x1]
    %v288 = vlaneseq
    %v289 = vshrl.u32 %v288, 7
    %v290 = vsub.s32 0, %v289
    %v291 = vrot.slane %v286, %v290
    %v293 = vmul.f32 %v285, %v291
    %vm294 = vcmask 523264
    %v295 = vsel %vm294, %v293, 0.0
    %296 = vadd.xlane.f32.xlu0 %v295
    %v297 = vpop.xlane.xlu0 %296
    %v298 = vld [vmem:[#allocation2] sm:$0x1]
    %v300 = vlaneseq
    %v301 = vshrl.u32 %v300, 7
    %v302 = vsub.s32 0, %v301
    %v303 = vrot.slane %v298, %v302
    %v305 = vadd.f32 %v297, %v303
    %v306 = vsub.f32 0.0, %v305
    %v307 = vmul.f32 %v306, 1.442695
    %v308 = vpow.pop %v307
    %v309 = vadd.f32 %v308, 1.0
    %v310 = vrcp.pop %v309
    %vm311 = vcmask 7168
    %312 = vst.msk [vmem:[#allocation14] sm:$0xff] %vm311, %v310
    // Predicated region
    $region54: #{tpu_custom_call.1} parent=1 // pred_check
      _
    $region55: #{tpu_custom_call.1} parent=1 // pred_check_branch
      %314 = sbr.rel (0) target = $region57
    $region56: #{tpu_custom_call.1} parent=1 // pred_region
      %s316 = ssub.s32 128, 128
      %317 = vsyncadd [#allocation5], %s316
      %s319 = sshll.u32 [#allocation14], 4
      %s320 = int_to_ptr.vmem [resolvable:$true] %s319
      %322 = dma.vmem_to_hbm [thread:$0]  %s320, 128, %s7, [#allocation5]
    $region57: #{tpu_custom_call.1} parent=1 // pred_fallthru
      _
    // Predicated region
    $region58: #{tpu_custom_call.1} parent=1 // pred_check
      _
    $region59: #{tpu_custom_call.1} parent=1 // pred_check_branch
      %324 = sbr.rel (0) target = $region61
    $region60: #{tpu_custom_call.1} parent=1 // pred_region
      %325 = dma.done [#allocation5], 128
    $region61: #{tpu_custom_call.1} parent=1 // pred_fallthru
      _
    %326 = vsyncpa [#allocation4], 1
    %327 = vsyncpa [#allocation7], 1
    %328 = vsyncpa [#allocation10], 1
    %329 = vsyncpa [#allocation13], 1
    %330 = vsyncpa [#allocation5], 1

</llo_original>
